<compile_context>
chip_gen: v7x
topology: tpu7x:2x2x1
jax: 0.10.0
libtpu: 0.0.40
codegen_flags: <defaults>
</compile_context>

<pallas_src>
import functools

import numpy as np
import jax
import jax.numpy as jnp
from jax.experimental import pallas as pl
from jax.experimental.pallas import tpu as pltpu


def _round_up(x, m):
    return (x + m - 1) // m * m


def _vmem_cap_bytes():
    """Physical per-core VMEM; conservative 64 MiB fallback (v7x)."""
    try:
        return int(pltpu.get_tpu_info().vmem_capacity_bytes)
    except Exception:
        return 64 << 20


# ----------------------------------------------------------------------------
# Pallas kernel: patch-embedding matmul + bias + position-embedding add
# ----------------------------------------------------------------------------
def _embed_kernel(patch_ref, pos_ref, w_ref, b_ref, o_ref):
    # patch_ref: (tm, Kp)  pos_ref: (tm, D)  w_ref: (Kp, D)  b_ref: (1, D)
    # o_ref:     (tm, D)
    y = jnp.dot(patch_ref[...], w_ref[...], preferred_element_type=jnp.float32)
    y = y + b_ref[...].astype(jnp.float32)
    y = y + pos_ref[...].astype(jnp.float32)      # VPU add (pre-gathered table)
    o_ref[...] = y.astype(o_ref.dtype)


# ----------------------------------------------------------------------------
# Position ids (vectorized, static-shape equivalent of the per-batch torch loop)
# ----------------------------------------------------------------------------
# TODO(synk): dynamic-length torch.arange/bucketize + boolean masked scatter has
# no static-shape in-kernel equivalent; it is scalar integer work done here (XLA).
def _compute_position_ids(patch_attention_mask, tgt_sizes, num_patches_per_side):
    B, nHmax, nWmax = patch_attention_mask.shape
    S = num_patches_per_side
    boundaries = jnp.arange(1, S, dtype=jnp.float32) / S  # (S-1,)
    n_flat = nHmax * nWmax

    def one(mask, tgt):
        nb_h = jnp.maximum(tgt[0].astype(jnp.int32), 1)
        nb_w = jnp.maximum(tgt[1].astype(jnp.int32), 1)
        frac_h = jnp.arange(nHmax, dtype=jnp.float32) / nb_h.astype(jnp.float32)
        frac_w = jnp.arange(nWmax, dtype=jnp.float32) / nb_w.astype(jnp.float32)
        # torch.bucketize(..., right=True) == count of boundaries <= value
        bucket_h = jnp.sum(boundaries[None, :] <= frac_h[:, None], axis=1).astype(jnp.int32)
        bucket_w = jnp.sum(boundaries[None, :] <= frac_w[:, None], axis=1).astype(jnp.int32)

        mask_flat = mask.reshape(-1)
        rank = jnp.cumsum(mask_flat.astype(jnp.int32)) - 1     # k-th True patch
        k = jnp.arange(n_flat, dtype=jnp.int32)
        r = jnp.clip(k // nb_w, 0, nHmax - 1)
        c = jnp.clip(k % nb_w, 0, nWmax - 1)
        pos_seq = bucket_h[r] * S + bucket_w[c]                # pos id of k-th valid patch
        ids = jnp.where(mask_flat, pos_seq[jnp.clip(rank, 0, n_flat - 1)], 0)
        return ids.astype(jnp.int32)

    return jax.vmap(one)(patch_attention_mask, tgt_sizes)


# ----------------------------------------------------------------------------
# Wrapper
# ----------------------------------------------------------------------------
@functools.partial(jax.jit, static_argnames=("patch_size", "num_patches_per_side",
                                              "tm", "compute_dtype"))
def siglip_vision_embeddings(pixel_values, conv_w, conv_b, pos_table,
                             patch_attention_mask, tgt_sizes,
                             *, patch_size, num_patches_per_side,
                             tm=512, compute_dtype=jnp.bfloat16):
    """pixel_values: [B, C, H, W]; conv_w: [D, C, P, P]; conv_b: [D];
    pos_table: [num_positions, D]; patch_attention_mask: [B, H//P, W//P] bool;
    tgt_sizes: [B, 2] int.  Returns [B, (H//P)*(W//P), D]."""
    B, C, H, W = pixel_values.shape
    D = conv_w.shape[0]
    P = patch_size
    nH, nW = H // P, W // P
    n_patches = nH * nW
    K = C * P * P
    Kp = _round_up(K, 128)                      # lane-aligned contraction dim
    cdt = jnp.dtype(compute_dtype)

    # --- im2col patchify in compute dtype (pure layout; matmul stays in-kernel)
    # TODO(synk): this still materializes one (M, Kp) copy in HBM; an NHWC input
    # or in-kernel unfold would remove that extra pass.
    x = pixel_values[:, :, : nH * P, : nW * P].astype(cdt)
    x = x.reshape(B, C, nH, P, nW, P).transpose(0, 2, 4, 1, 3, 5)  # (B,nH,nW,C,P,P)
    patches = x.reshape(B * n_patches, K)
    if Kp != K:
        patches = jnp.pad(patches, ((0, 0), (0, Kp - K)))

    w2d = conv_w.reshape(D, K).T.astype(cdt)     # (K, D) -- matches (C,P,P) flatten
    if Kp != K:
        w2d = jnp.pad(w2d, ((0, Kp - K), (0, 0)))
    b2d = conv_b.reshape(1, D).astype(jnp.float32)

    # --- data-dependent position ids (scalar work) + wrapper-side gather ------
    pos_ids = _compute_position_ids(patch_attention_mask, tgt_sizes,
                                    num_patches_per_side)          # (B, n_patches)
    pos_emb = jnp.take(pos_table.astype(cdt), pos_ids.reshape(-1), axis=0)  # (M, D)

    # --- row tiling: no M padding, ragged last block masked by Pallas ---------
    M = B * n_patches
    tm_eff = min(tm, _round_up(M, 8))
    if M > 16 and pl.cdiv(M, tm_eff) < 2:        # expose >=2 steps (v7x megacore)
        tm_eff = max(8, _round_up(pl.cdiv(M, 2), 8))
    grid = (pl.cdiv(M, tm_eff),)

    # --- chip-aware VMEM budget ------------------------------------------------
    cap = _vmem_cap_bytes()
    out_b = jnp.dtype(pixel_values.dtype).itemsize
    resident = Kp * D * cdt.itemsize + D * 4              # conv weight + bias
    tile_in = tm_eff * (Kp + D) * cdt.itemsize            # patch + pos tiles
    tile_out = tm_eff * D * out_b
    scratch = tm_eff * D * 4                               # f32 intermediates
    vmem_limit = int(min(resident + 2 * tile_in + 2 * tile_out + scratch + (8 << 20),
                         cap))

    out2d = pl.pallas_call(
        _embed_kernel,
        out_shape=jax.ShapeDtypeStruct((M, D), pixel_values.dtype),
        grid=grid,
        in_specs=[
            pl.BlockSpec((tm_eff, Kp), lambda i: (i, 0)),         # patch row tile
            pl.BlockSpec((tm_eff, D), lambda i: (i, 0)),          # gathered pos-emb tile
            pl.BlockSpec(memory_space=pltpu.MemorySpace.VMEM),    # conv weight (resident)
            pl.BlockSpec(memory_space=pltpu.MemorySpace.VMEM),    # conv bias (resident)
        ],
        out_specs=pl.BlockSpec((tm_eff, D), lambda i: (i, 0)),
        compiler_params=pltpu.CompilerParams(
            dimension_semantics=("parallel",),
            vmem_limit_bytes=vmem_limit),
    )(patches, pos_emb, w2d, b2d)

    return out2d.reshape(B, n_patches, D)


# ----------------------------------------------------------------------------
# Reference (faithful to the PyTorch module, f32 / HIGHEST precision)
# ----------------------------------------------------------------------------
def reference_embeddings(pixel_values, conv_w, conv_b, pos_table,
                         patch_attention_mask, tgt_sizes,
                         patch_size, num_patches_per_side):
    B, C, H, W = pixel_values.shape
    D = conv_w.shape[0]
    P = patch_size
    nH, nW = H // P, W // P

    conv_out = jax.lax.conv_general_dilated(
        pixel_values.astype(jnp.float32), conv_w.astype(jnp.float32),
        window_strides=(P, P), padding="VALID",
        dimension_numbers=("NCHW", "OIHW", "NCHW"),
        precision=jax.lax.Precision.HIGHEST)
    embeds = conv_out.reshape(B, D, nH * nW).transpose(0, 2, 1)
    embeds = embeds + conv_b.astype(jnp.float32)[None, None, :]

    # Per-batch position ids, exactly mirroring the torch loop (numpy).
    S = num_patches_per_side
    boundaries = np.arange(1.0 / S, 1.0, 1.0 / S)
    mask_np = np.asarray(patch_attention_mask)
    tgt_np = np.asarray(tgt_sizes)
    position_ids = np.zeros((B, nH * nW), dtype=np.int32)
    for b in range(B):
        nb_h, nb_w = int(tgt_np[b, 0]), int(tgt_np[b, 1])
        frac_h = np.arange(0, 1 - 1e-6, 1.0 / nb_h)
        frac_w = np.arange(0, 1 - 1e-6, 1.0 / nb_w)
        bh = np.searchsorted(boundaries, frac_h, side="right")
        bw = np.searchsorted(boundaries, frac_w, side="right")
        pos_ids = (bh[:, None] * S + bw).reshape(-1)
        flat_mask = mask_np[b].reshape(-1)
        position_ids[b, flat_mask] = pos_ids

    pos_emb = pos_table.astype(jnp.float32)[jnp.asarray(position_ids)]
    return (embeds + pos_emb).astype(pixel_values.dtype)


if __name__ == "__main__":
    # Small shapes consistent with the module: batch=2, channels=3, image 32x32,
    # patch 8 -> 4x4 = 16 patches/positions, hidden (embed_dim) = 32.
    B, C = 2, 3
    image_size, patch_size = 32, 8
    embed_dim = 32
    S = image_size // patch_size            # num_patches_per_side = 4
    num_positions = S * S                   # 16

    key = jax.random.PRNGKey(0)
    k0, k1, k2, k3 = jax.random.split(key, 4)
    pixel_values = jax.random.normal(k0, (B, C, image_size, image_size), dtype=jnp.float32)
    conv_w = jax.random.normal(k1, (embed_dim, C, patch_size, patch_size), dtype=jnp.float32) * 0.02
    conv_b = jax.random.normal(k2, (embed_dim,), dtype=jnp.float32) * 0.02
    pos_table = jax.random.normal(k3, (num_positions, embed_dim), dtype=jnp.float32) * 0.02

    # NaViT-style variable sizes: batch 0 is full 4x4, batch 1 is 2x3 valid patches.
    tgt_sizes = jnp.array([[4, 4], [2, 3]], dtype=jnp.int32)
    rows = jnp.arange(S)[None, :, None]
    cols = jnp.arange(S)[None, None, :]
    patch_attention_mask = ((rows < tgt_sizes[:, 0][:, None, None])
                            & (cols < tgt_sizes[:, 1][:, None, None]))

    ref = reference_embeddings(
        pixel_values, conv_w, conv_b, pos_table,
        patch_attention_mask, tgt_sizes, patch_size, S)

    # Production path: bf16 operands, f32 MXU accumulation.
    out_bf16 = siglip_vision_embeddings(
        pixel_values, conv_w, conv_b, pos_table,
        patch_attention_mask, tgt_sizes,
        patch_size=patch_size, num_patches_per_side=S,
        tm=512, compute_dtype=jnp.bfloat16)
    jax.block_until_ready(out_bf16)

    # Full-precision path (sanity check on exact numerics).
    out_f32 = siglip_vision_embeddings(
        pixel_values, conv_w, conv_b, pos_table,
        patch_attention_mask, tgt_sizes,
        patch_size=patch_size, num_patches_per_side=S,
        tm=512, compute_dtype=jnp.float32)
    jax.block_until_ready(out_f32)

    assert out_bf16.shape == (B, num_positions, embed_dim)
    assert out_f32.shape == (B, num_positions, embed_dim)
    assert jnp.allclose(out_f32, ref, atol=2e-3, rtol=2e-3), "f32 path mismatch vs reference"
    assert jnp.allclose(out_bf16, ref, atol=2e-2, rtol=2e-2), "bf16 path mismatch vs reference"
    print("KERNEL_OK")
</pallas_src>

<mosaic_0001>
module attributes {stable_mosaic.version = 11 : i64} {
  func.func @_embed_kernel(%arg0: i32, %arg1: memref<16x256xbf16, #tpu.memory_space<vmem>>, %arg2: memref<16x32xbf16, #tpu.memory_space<vmem>>, %arg3: memref<256x32xbf16, #tpu.memory_space<vmem>>, %arg4: memref<1x32xf32, #tpu.memory_space<vmem>>, %arg5: memref<16x32xf32, #tpu.memory_space<vmem>>) attributes {dimension_semantics = [#tpu.dimension_semantics<parallel>], iteration_bounds = array<i64: 2>, scalar_prefetch = 0 : i64, scratch_operands = 0 : i64, tpu.core_type = #tpu.core_type<tc>, window_params = [{transform_indices = @transform_0, window_bounds = array<i64: 16, 256>}, {transform_indices = @transform_1, window_bounds = array<i64: 16, 32>}, {pipeline_mode = #tpu.pipeline_mode<synchronous>, transform_indices = @transform_2, window_bounds = array<i64: 256, 32>}, {pipeline_mode = #tpu.pipeline_mode<synchronous>, transform_indices = @transform_3, window_bounds = array<i64: 1, 32>}, {transform_indices = @transform_4, window_bounds = array<i64: 16, 32>}]} {
    %c0 = arith.constant 0 : index
    %c0_0 = arith.constant 0 : index
    %0 = vector.load %arg1[%c0, %c0_0] : memref<16x256xbf16, #tpu.memory_space<vmem>>, vector<16x256xbf16>
    %c0_1 = arith.constant 0 : index
    %c0_2 = arith.constant 0 : index
    %1 = vector.load %arg3[%c0_1, %c0_2] : memref<256x32xbf16, #tpu.memory_space<vmem>>, vector<256x32xbf16>
    %cst = arith.constant dense<0.000000e+00> : vector<16x32xf32>
    %2 = tpu.matmul %0, %1, %cst {dimension_numbers = #tpu.dot_dimension_numbers<[1], [0], [0], [1], [0, 0, 1, 1], [], []>} : vector<16x256xbf16>, vector<256x32xbf16>, vector<16x32xf32> -> vector<16x32xf32>
    %c0_3 = arith.constant 0 : index
    %c0_4 = arith.constant 0 : index
    %3 = vector.load %arg4[%c0_3, %c0_4] : memref<1x32xf32, #tpu.memory_space<vmem>>, vector<1x32xf32>
    %4 = vector.broadcast %3 : vector<1x32xf32> to vector<16x32xf32>
    %5 = arith.addf %2, %4 : vector<16x32xf32>
    %c0_5 = arith.constant 0 : index
    %c0_6 = arith.constant 0 : index
    %6 = vector.load %arg2[%c0_5, %c0_6] : memref<16x32xbf16, #tpu.memory_space<vmem>>, vector<16x32xbf16>
    %7 = arith.extf %6 : vector<16x32xbf16> to vector<16x32xf32>
    %8 = arith.addf %5, %7 : vector<16x32xf32>
    %c0_7 = arith.constant 0 : index
    %c0_8 = arith.constant 0 : index
    %9 = vector.load %arg5[%c0_7, %c0_8] : memref<16x32xf32, #tpu.memory_space<vmem>>, vector<16x32xf32>
    tpu.vector_store %arg5[%c0_7, %c0_8], %8 {strides = array<i32>} : memref<16x32xf32, #tpu.memory_space<vmem>>, vector<16x32xf32>,
    return
  }
  func.func @transform_0(%arg0: i32) -> (i32, i32) {
    %c0_i32 = arith.constant 0 : i32
    %c0_i32_0 = arith.constant 0 : i32
    return %arg0, %c0_i32 : i32, i32
  }
  func.func @transform_1(%arg0: i32) -> (i32, i32) {
    %c0_i32 = arith.constant 0 : i32
    %c0_i32_0 = arith.constant 0 : i32
    return %arg0, %c0_i32 : i32, i32
  }
  func.func @transform_2(%arg0: i32) -> (i32, i32) {
    %c0_i32 = arith.constant 0 : i32
    %c0_i32_0 = arith.constant 0 : i32
    %c0_i32_1 = arith.constant 0 : i32
    return %c0_i32, %c0_i32_0 : i32, i32
  }
  func.func @transform_3(%arg0: i32) -> (i32, i32) {
    %c0_i32 = arith.constant 0 : i32
    %c0_i32_0 = arith.constant 0 : i32
    %c0_i32_1 = arith.constant 0 : i32
    return %c0_i32, %c0_i32_0 : i32, i32
  }
  func.func @transform_4(%arg0: i32) -> (i32, i32) {
    %c0_i32 = arith.constant 0 : i32
    %c0_i32_0 = arith.constant 0 : i32
    return %arg0, %c0_i32 : i32, i32
  }
}

</mosaic_0001>

<llo_original>
// kernel: siglip_vision_embeddings.1
$region0: #{siglip_vision_embeddings.1}
  #allocation0 [shape = 'u32[]', space=smem, size = 0x4, offset = 0x4, fixed_abs, tag = 'smem constant byte address 0x4 - core index']
  #allocation1 [shape = 'u32[144,128]{1,0:T(1,128)}', space=vmem, size = 0x12000, scoped, tag = 'internal scratch']
  %s0 = inlined_call_operand.vmem [shape: bf16[32,256], index: 0, kind: input, shape index: {}]
  %s1 = inlined_call_operand.vmem [shape: bf16[32,32], index: 1, kind: input, shape index: {}]
  %s2 = inlined_call_operand.vmem [shape: bf16[256,32], index: 2, kind: input, shape index: {}]
  %s3 = inlined_call_operand.vmem [shape: f32[1,32], index: 3, kind: input, shape index: {}]
  %s4 = inlined_call_operand.hbm [shape: f32[32,32], index: 4, kind: output, shape index: {}]
  %s5 = sld [smem:[#allocation0]]
  $region49: #{siglip_vision_embeddings.1} parent=0
    _
  %s7 = ssub.s32 1, %s5
  %s8 = scalar_select 0, %s7, %s5
  $region1: #{siglip_vision_embeddings.1} parent=0
    #allocation2 [shape = 'u8[16384]{0}', space=vmem, size = 0x4000, scoped, tag = 'output window, operand 0']
    #allocation3 [shape = 's32[2]{0}', space=sflag, size = 0x8, scoped, tag = 'scoped memory for siglip_vision_embeddings.1']
    %9 = vsyncpa [#allocation3], 0
    %s10 = scalar_lea.sflag [#allocation3], 1
    %11 = vsyncpa %s10, 0
    loop: start=0, step=1, limit=4
    $region2: #{siglip_vision_embeddings.1} parent=1 // loop_pre_header
      _
    $region3: #{siglip_vision_embeddings.1} parent=1 // loop_header
      %s13 = sphi 0, %s17
      %p14 = scmp.ge.s32.totalorder %s13, 4
      %s23 = sphi 0, %s25
      %s26 = sphi 0, %s23
      %s27 = sphi 0, %s26
      %s43 = sphi 0, %s27
      %s49 = sphi 0, %s51
      %s52 = sphi 0, %s49
      %s53 = sphi 0, %s52
      %s69 = sphi 0, %s53
      %s73 = sphi 0, %s73
      %s75 = sphi 0, %s73
      %s76 = sphi 0, %s75
      %s90 = sphi 0, %s76
      %s94 = sphi 0, %s94
      %s96 = sphi 0, %s94
      %s97 = sphi 0, %s96
      %s111 = sphi 0, %s97
      %s117 = sphi 0, %s119
      %s120 = sphi 0, %s117
      %s121 = sphi 0, %s120
      %s137 = sphi 0, %s121
    $region4: #{siglip_vision_embeddings.1} parent=1 // loop_header_branch
      %16 = sbr.rel (%p14) target = $region8
    $region5: #{siglip_vision_embeddings.1} parent=1 // loop_body
      %s18 = ssub.s32 %s13, 1
      %s19 = ssub.s32 %s13, 2
      %s20 = sadd.s32 %s13, 1
      %s21 = ssub.s32 %s13, %s20
      %p22 = scmp.eq.s32.totalorder %s21, 0
      %s24 = sadd.s32 %s23, 1
      %s25 = scalar_select %p22, %s23, %s24
      %p28 = pneg %p22
      %p29 = scmp.eq.s32.totalorder %s13, 1
      %p30 = por %p28, %p29
      %p31 = scmp.ne.s32.totalorder %s23, %s26
      %p32 = scmp.eq.s32.totalorder %s13, 0
      %p33 = por %p31, %p32
      %p34 = scmp.ne.s32.totalorder %s23, %s26
      %p35 = scmp.eq.s32.totalorder %s18, 1
      %p36 = por %p34, %p35
      %p37 = scmp.ne.s32.totalorder %s26, %s27
      %p38 = scmp.eq.s32.totalorder %s18, 0
      %p39 = por %p37, %p38
      %p40 = scmp.ne.s32.totalorder %s26, %s27
      %p41 = scmp.eq.s32.totalorder %s19, 1
      %p42 = por %p40, %p41
      %p44 = scmp.ne.s32.totalorder %s27, %s43
      %p45 = scmp.eq.s32.totalorder %s19, 0
      %p46 = por %p44, %p45
      %s47 = ssub.s32 %s13, %s20
      %p48 = scmp.eq.s32.totalorder %s47, 0
      %s50 = sadd.s32 %s49, 1
      %s51 = scalar_select %p48, %s49, %s50
      %p54 = pneg %p48
      %p55 = scmp.eq.s32.totalorder %s13, 1
      %p56 = por %p54, %p55
      %p57 = scmp.ne.s32.totalorder %s49, %s52
      %p58 = scmp.eq.s32.totalorder %s13, 0
      %p59 = por %p57, %p58
      %p60 = scmp.ne.s32.totalorder %s49, %s52
      %p61 = scmp.eq.s32.totalorder %s18, 1
      %p62 = por %p60, %p61
      %p63 = scmp.ne.s32.totalorder %s52, %s53
      %p64 = scmp.eq.s32.totalorder %s18, 0
      %p65 = por %p63, %p64
      %p66 = scmp.ne.s32.totalorder %s52, %s53
      %p67 = scmp.eq.s32.totalorder %s19, 1
      %p68 = por %p66, %p67
      %p70 = scmp.ne.s32.totalorder %s53, %s69
      %p71 = scmp.eq.s32.totalorder %s19, 0
      %p72 = por %p70, %p71
      %s74 = sadd.s32 %s73, 1
      %p77 = scmp.eq.s32.totalorder %s13, 1
      %p78 = scmp.ne.s32.totalorder %s73, %s75
      %p79 = scmp.eq.s32.totalorder %s13, 0
      %p80 = por %p78, %p79
      %p81 = scmp.ne.s32.totalorder %s73, %s75
      %p82 = scmp.eq.s32.totalorder %s18, 1
      %p83 = por %p81, %p82
      %p84 = scmp.ne.s32.totalorder %s75, %s76
      %p85 = scmp.eq.s32.totalorder %s18, 0
      %p86 = por %p84, %p85
      %p87 = scmp.ne.s32.totalorder %s75, %s76
      %p88 = scmp.eq.s32.totalorder %s19, 1
      %p89 = por %p87, %p88
      %p91 = scmp.ne.s32.totalorder %s76, %s90
      %p92 = scmp.eq.s32.totalorder %s19, 0
      %p93 = por %p91, %p92
      %s95 = sadd.s32 %s94, 1
      %p98 = scmp.eq.s32.totalorder %s13, 1
      %p99 = scmp.ne.s32.totalorder %s94, %s96
      %p100 = scmp.eq.s32.totalorder %s13, 0
      %p101 = por %p99, %p100
      %p102 = scmp.ne.s32.totalorder %s94, %s96
      %p103 = scmp.eq.s32.totalorder %s18, 1
      %p104 = por %p102, %p103
      %p105 = scmp.ne.s32.totalorder %s96, %s97
      %p106 = scmp.eq.s32.totalorder %s18, 0
      %p107 = por %p105, %p106
      %p108 = scmp.ne.s32.totalorder %s96, %s97
      %p109 = scmp.eq.s32.totalorder %s19, 1
      %p110 = por %p108, %p109
      %p112 = scmp.ne.s32.totalorder %s97, %s111
      %p113 = scmp.eq.s32.totalorder %s19, 0
      %p114 = por %p112, %p113
      %s115 = ssub.s32 %s13, %s20
      %p116 = scmp.eq.s32.totalorder %s115, 0
      %s118 = sadd.s32 %s117, 1
      %s119 = scalar_select %p116, %s117, %s118
      %p122 = pneg %p116
      %p123 = scmp.eq.s32.totalorder %s13, 1
      %p124 = por %p122, %p123
      %p125 = scmp.ne.s32.totalorder %s117, %s120
      %p126 = scmp.eq.s32.totalorder %s13, 0
      %p127 = por %p125, %p126
      %p128 = scmp.ne.s32.totalorder %s117, %s120
      %p129 = scmp.eq.s32.totalorder %s18, 1
      %p130 = por %p128, %p129
      %p131 = scmp.ne.s32.totalorder %s120, %s121
      %p132 = scmp.eq.s32.totalorder %s18, 0
      %p133 = por %p131, %p132
      %p134 = scmp.ne.s32.totalorder %s120, %s121
      %p135 = scmp.eq.s32.totalorder %s19, 1
      %p136 = por %p134, %p135
      %p138 = scmp.ne.s32.totalorder %s121, %s137
      %p139 = scmp.eq.s32.totalorder %s19, 0
      %p140 = por %p138, %p139
      %p141 = scmp.le.s32.totalorder 1, %s13
      %p142 = scmp.lt.s32.totalorder %s13, 3
      %p143 = pnand %p141, %p142
      %p144 = pneg %p143
      // Predicated region
      $region9: #{siglip_vision_embeddings.1} parent=5 // pred_check
        _
      $region10: #{siglip_vision_embeddings.1} parent=5 // pred_check_branch
        %146 = sbr.rel (%p143) target = $region12
      $region11: #{siglip_vision_embeddings.1} parent=5 // pred_region
        %s147 = ssub.s32 %s13, 1
        // Predicated region
        $region13: #{siglip_vision_embeddings.1} parent=11 // pred_check
          %p148 = pneg %p86
        $region14: #{siglip_vision_embeddings.1} parent=11 // pred_check_branch
          %150 = sbr.rel (%p148) target = $region16
        $region15: #{siglip_vision_embeddings.1} parent=11 // pred_region
          _
        $region16: #{siglip_vision_embeddings.1} parent=11 // pred_fallthru
          _
        // Predicated region
        $region17: #{siglip_vision_embeddings.1} parent=11 // pred_check
          %p151 = pneg %p107
        $region18: #{siglip_vision_embeddings.1} parent=11 // pred_check_branch
          %153 = sbr.rel (%p151) target = $region20
        $region19: #{siglip_vision_embeddings.1} parent=11 // pred_region
          _
        $region20: #{siglip_vision_embeddings.1} parent=11 // pred_fallthru
          _
      $region12: #{siglip_vision_embeddings.1} parent=5 // pred_fallthru
        _
      %p154 = scmp.lt.s32.totalorder %s13, 2
      // Predicated region
      $region21: #{siglip_vision_embeddings.1} parent=5 // pred_check
        %p155 = pneg %p154
      $region22: #{siglip_vision_embeddings.1} parent=5 // pred_check_branch
        %157 = sbr.rel (%p155) target = $region24
      $region23: #{siglip_vision_embeddings.1} parent=5 // pred_region
        // Predicated region
        $region25: #{siglip_vision_embeddings.1} parent=23 // pred_check
          %p158 = pneg %p33
        $region26: #{siglip_vision_embeddings.1} parent=23 // pred_check_branch
          %160 = sbr.rel (%p158) target = $region28
        $region27: #{siglip_vision_embeddings.1} parent=23 // pred_region
          %s161 = smul.u32 2, %s13
          %p162 = scmp.lt.s32.totalorder %s161, 3
          %s163 = scalar_select %p162, %s161, 3
          %s164 = smul.addr %s163, 2
          %s165 = smul.addr %s164, 4
          %s166 = scalar_lea.vmem %s0, %s165
          %s167 = smul.u32 2, %s13
        $region28: #{siglip_vision_embeddings.1} parent=23 // pred_fallthru
          _
        // Predicated region
        $region29: #{siglip_vision_embeddings.1} parent=23 // pred_check
          %p168 = pneg %p59
        $region30: #{siglip_vision_embeddings.1} parent=23 // pred_check_branch
          %170 = sbr.rel (%p168) target = $region32
        $region31: #{siglip_vision_embeddings.1} parent=23 // pred_region
          %s171 = smul.u32 2, %s13
          %p172 = scmp.lt.s32.totalorder %s171, 3
          %s173 = scalar_select %p172, %s171, 3
          %s174 = smul.addr %s173, 4
          %s175 = scalar_lea.vmem %s1, %s174
          %s176 = smul.u32 2, %s13
        $region32: #{siglip_vision_embeddings.1} parent=23 // pred_fallthru
          _
      $region24: #{siglip_vision_embeddings.1} parent=5 // pred_fallthru
        _
      %p177 = scmp.le.s32.totalorder 1, %s13
      %p178 = scmp.lt.s32.totalorder %s13, 3
      %p179 = pnand %p177, %p178
      %p180 = pneg %p179
      // Predicated region
      $region33: #{siglip_vision_embeddings.1} parent=5 // pred_check
        _
      $region34: #{siglip_vision_embeddings.1} parent=5 // pred_check_branch
        %182 = sbr.rel (%p179) target = $region36
      $region35: #{siglip_vision_embeddings.1} parent=5 // pred_region
        %s183 = ssub.s32 %s13, 1
        %s184 = smul.u32 2, %s18
        %p185 = scmp.lt.s32.totalorder %s184, 3
        %s186 = scalar_select %p185, %s184, 3
        %s187 = smul.addr %s186, 2
        %s188 = smul.addr %s187, 4
        %s189 = scalar_lea.vmem %s0, %s188
        %p190 = pneg %p39
        %p191 = pneg %p36
        %s192 = smul.u32 2, %s18
        %p193 = scmp.lt.s32.totalorder %s192, 3
        %s194 = scalar_select %p193, %s192, 3
        %s195 = smul.addr %s194, 4
        %s196 = scalar_lea.vmem %s1, %s195
        %p197 = pneg %p65
        %p198 = pneg %p62
        %p199 = pneg %p86
        %p200 = pneg %p83
        %p201 = pneg %p107
        %p202 = pneg %p104
        %p203 = pneg %p133
        %p204 = pneg %p130
        %s205 = sand.u32 %s120, 1
        %s206 = scalar_lea.sflag [#allocation3], %s205
        %s207 = sand.u32 %s120, 1
        %s208 = smul.addr %s207, 16
        %s209 = scalar_lea.vmem [#allocation2], %s208
        %s210 = smul.u32 2, %s18
        %p211 = scmp.lt.s32.totalorder %s210, 3
        %s212 = scalar_select %p211, %s210, 3
        %s213 = smul.addr %s212, 2
        %s214 = smul.addr %s213, 4
        %s215 = scalar_lea.vmem %s0, %s214
        %s216 = smul.u32 2, %s18
        %s217 = smul.u32 2, %s18
        %p218 = scmp.lt.s32.totalorder %s217, 3
        %s219 = scalar_select %p218, %s217, 3
        %s220 = smul.addr %s219, 4
        %s221 = scalar_lea.vmem %s1, %s220
        %s222 = smul.u32 2, %s18
        %s223 = smul.u32 2, %s18
        %v225 = vld [vmem:[%s215] sm:$0xff]
        %v226 = vld [vmem:[%s215 + $0x8] sm:$0xff]
        %v227 = vld [vmem:[%s2] sm:$0xf]
        %v228 = vld [vmem:[%s2 + $0x4] sm:$0xf]
        %v229 = vld [vmem:[%s2 + $0x8] sm:$0xf]
        %v230 = vld [vmem:[%s2 + $0xc] sm:$0xf]
        %v231 = vld [vmem:[%s2 + $0x10] sm:$0xf]
        %v232 = vld [vmem:[%s2 + $0x14] sm:$0xf]
        %v233 = vld [vmem:[%s2 + $0x18] sm:$0xf]
        %v234 = vld [vmem:[%s2 + $0x1c] sm:$0xf]
        %v235 = vld [vmem:[%s2 + $0x20] sm:$0xf]
        %v236 = vld [vmem:[%s2 + $0x24] sm:$0xf]
        %v237 = vld [vmem:[%s2 + $0x28] sm:$0xf]
        %v238 = vld [vmem:[%s2 + $0x2c] sm:$0xf]
        %v239 = vld [vmem:[%s2 + $0x30] sm:$0xf]
        %v240 = vld [vmem:[%s2 + $0x34] sm:$0xf]
        %v241 = vld [vmem:[%s2 + $0x38] sm:$0xf]
        %v242 = vld [vmem:[%s2 + $0x3c] sm:$0xf]
        %v243 = vld [vmem:[%s2 + $0x40] sm:$0xf]
        %v244 = vld [vmem:[%s2 + $0x44] sm:$0xf]
        %v245 = vld [vmem:[%s2 + $0x48] sm:$0xf]
        %v246 = vld [vmem:[%s2 + $0x4c] sm:$0xf]
        %v247 = vld [vmem:[%s2 + $0x50] sm:$0xf]
        %v248 = vld [vmem:[%s2 + $0x54] sm:$0xf]
        %v249 = vld [vmem:[%s2 + $0x58] sm:$0xf]
        %v250 = vld [vmem:[%s2 + $0x5c] sm:$0xf]
        %v251 = vld [vmem:[%s2 + $0x60] sm:$0xf]
        %v252 = vld [vmem:[%s2 + $0x64] sm:$0xf]
        %v253 = vld [vmem:[%s2 + $0x68] sm:$0xf]
        %v254 = vld [vmem:[%s2 + $0x6c] sm:$0xf]
        %v255 = vld [vmem:[%s2 + $0x70] sm:$0xf]
        %v256 = vld [vmem:[%s2 + $0x74] sm:$0xf]
        %v257 = vld [vmem:[%s2 + $0x78] sm:$0xf]
        %v258 = vld [vmem:[%s2 + $0x7c] sm:$0xf]
        %v259 = vld [vmem:[%s3] sm:$0x1]
        %v261 = vlaneseq
        %v262 = vshrl.u32 %v261, 7
        %v263 = vsub.s32 0, %v262
        %v264 = vrot.slane %v259, %v263
        %v268 = vunpack.c.l.b16 %v225
        %v269 = vunpack.c.h.b16 %v225
        %v270 = vunpack.c.l.b16 %v226
        %v271 = vunpack.c.h.b16 %v226
        %v272 = vpack.c.b16 %v270, %v268
        %v273 = vpack.c.b16 %v271, %v269
        %v308 = vunpack.c.l.b16 %v227
        %v309 = vunpack.c.l.b16 %v228
        %v310 = vunpack.c.l.b16 %v229
        %v311 = vunpack.c.l.b16 %v230
        %v312 = vunpack.c.l.b16 %v231
        %v313 = vunpack.c.l.b16 %v232
        %v314 = vunpack.c.l.b16 %v233
        %v315 = vunpack.c.l.b16 %v234
        %v316 = vunpack.c.l.b16 %v235
        %v317 = vunpack.c.l.b16 %v236
        %v318 = vunpack.c.l.b16 %v237
        %v319 = vunpack.c.l.b16 %v238
        %v320 = vunpack.c.l.b16 %v239
        %v321 = vunpack.c.l.b16 %v240
        %v322 = vunpack.c.l.b16 %v241
        %v323 = vunpack.c.l.b16 %v242
        %v324 = vunpack.c.l.b16 %v243
        %v325 = vunpack.c.l.b16 %v244
        %v326 = vunpack.c.l.b16 %v245
        %v327 = vunpack.c.l.b16 %v246
        %v328 = vunpack.c.l.b16 %v247
        %v329 = vunpack.c.l.b16 %v248
        %v330 = vunpack.c.l.b16 %v249
        %v331 = vunpack.c.l.b16 %v250
        %v332 = vunpack.c.l.b16 %v251
        %v333 = vunpack.c.l.b16 %v252
        %v334 = vunpack.c.l.b16 %v253
        %v335 = vunpack.c.l.b16 %v254
        %v336 = vunpack.c.l.b16 %v255
        %v337 = vunpack.c.l.b16 %v256
        %v338 = vunpack.c.l.b16 %v257
        %v339 = vunpack.c.l.b16 %v258
        %v340 = vpack.c.b16 %v309, %v308
        %v341 = vpack.c.b16 %v311, %v310
        %v342 = vpack.c.b16 %v313, %v312
        %v343 = vpack.c.b16 %v315, %v314
        %v344 = vpack.c.b16 %v317, %v316
        %v345 = vpack.c.b16 %v319, %v318
        %v346 = vpack.c.b16 %v321, %v320
        %v347 = vpack.c.b16 %v323, %v322
        %v348 = vpack.c.b16 %v325, %v324
        %v349 = vpack.c.b16 %v327, %v326
        %v350 = vpack.c.b16 %v329, %v328
        %v351 = vpack.c.b16 %v331, %v330
        %v352 = vpack.c.b16 %v333, %v332
        %v353 = vpack.c.b16 %v335, %v334
        %v354 = vpack.c.b16 %v337, %v336
        %v355 = vpack.c.b16 %v339, %v338
        %372 = vmatprep.subr.bf16.mxu0 0
        %373 = vmatpush1.bf16.msra.mxu0 %v340
        %374 = vmatprep.subr.bf16.mxu0 0
        %375 = vmatpush1.bf16.msra.mxu0 %v341
        %376 = vmatprep.subr.bf16.mxu0 0
        %377 = vmatpush1.bf16.msra.mxu0 %v342
        %378 = vmatprep.subr.bf16.mxu0 0
        %379 = vmatpush1.bf16.msra.mxu0 %v343
        %380 = vmatprep.subr.bf16.mxu0 0
        %381 = vmatpush1.bf16.msra.mxu0 %v344
        %382 = vmatprep.subr.bf16.mxu0 0
        %383 = vmatpush1.bf16.msra.mxu0 %v345
        %384 = vmatprep.subr.bf16.mxu0 0
        %385 = vmatpush1.bf16.msra.mxu0 %v346
        %386 = vmatprep.subr.bf16.mxu0 0
        %387 = vmatpush1.bf16.msra.mxu0 %v347
        %388 = vmatprep.subr.bf16.mxu0 0
        %389 = vmatpush1.bf16.msra.mxu0 %v348
        %390 = vmatprep.subr.bf16.mxu0 0
        %391 = vmatpush1.bf16.msra.mxu0 %v349
        %392 = vmatprep.subr.bf16.mxu0 0
        %393 = vmatpush1.bf16.msra.mxu0 %v350
        %394 = vmatprep.subr.bf16.mxu0 0
        %395 = vmatpush1.bf16.msra.mxu0 %v351
        %396 = vmatprep.subr.bf16.mxu0 0
        %397 = vmatpush1.bf16.msra.mxu0 %v352
        %398 = vmatprep.subr.bf16.mxu0 0
        %399 = vmatpush1.bf16.msra.mxu0 %v353
        %400 = vmatprep.subr.bf16.mxu0 0
        %401 = vmatpush1.bf16.msra.mxu0 %v354
        %402 = vmatprep.subr.bf16.mxu0 0
        %403 = vmatpush1.bf16.msra.mxu0 %v355
        %404 = vmatprep.mubr.bf16.mxu0 %v273
        %405 = vmatmul.mubr.bf16.gmra.mrb[0].mxu0 %v272
        %v406 = vpop.f32.mrb[0].mxu0
        %v407 = vadd.f32 %v264, %v406
        %v408 = vpop.f32.mrb[0].mxu0
        %v409 = vpop.f32.mrb[0].mxu0
        %v410 = vadd.f32 %v264, %v409
        %v411 = vpop.f32.mrb[0].mxu0
        %412 = vdwg.mxu0
        %v413 = vld [vmem:[%s221] sm:$0xf]
        %v414 = vld [vmem:[%s221 + $0x4] sm:$0xf]
        %v415 = vunpack.c.l.bf16 %v413
        %v416 = vunpack.c.l.bf16 %v414
        %v417 = vadd.f32 %v407, %v415
        %v418 = vadd.f32 %v410, %v416
        %vm419 = vcmask 261120
        %420 = vst.msk [vmem:[%s209] sm:$0xff] %vm419, %v417
        %421 = vst.msk [vmem:[%s209 + $0x8] sm:$0xff] %vm419, %v418
        %s422 = sand.u32 %s120, 1
        %s423 = scalar_lea.sflag [#allocation3], %s422
        %s424 = sand.u32 %s120, 1
        %s425 = smul.addr %s424, 16
        %s426 = scalar_lea.vmem [#allocation2], %s425
        // Predicated region
        $region37: #{siglip_vision_embeddings.1} parent=35 // pred_check
          %p427 = pneg %p130
        $region38: #{siglip_vision_embeddings.1} parent=35 // pred_check_branch
          %429 = sbr.rel (%p427) target = $region40
        $region39: #{siglip_vision_embeddings.1} parent=35 // pred_region
          %s430 = smul.u32 2, %s18
          %s432 = ssub.s32 256, 256
          %433 = vsyncadd %s423, %s432
          %s434 = smul.addr %s430, 128
          %s435 = scalar_lea.hbm %s4, %s434
          %s436 = sshll.u32 %s426, 4
          %s437 = int_to_ptr.vmem [resolvable:$true] %s436
          %442 = dma.vmem_to_hbm [thread:$0]  %s437, 256, %s435, %s423, 128, 128, 8
        $region40: #{siglip_vision_embeddings.1} parent=35 // pred_fallthru
          _
      $region36: #{siglip_vision_embeddings.1} parent=5 // pred_fallthru
        _
      %p443 = scmp.le.s32.totalorder 2, %s13
      // Predicated region
      $region41: #{siglip_vision_embeddings.1} parent=5 // pred_check
        %p444 = pneg %p443
      $region42: #{siglip_vision_embeddings.1} parent=5 // pred_check_branch
        %446 = sbr.rel (%p444) target = $region44
      $region43: #{siglip_vision_embeddings.1} parent=5 // pred_region
        %s447 = ssub.s32 %s13, 2
        // Predicated region
        $region45: #{siglip_vision_embeddings.1} parent=43 // pred_check
          %p448 = pneg %p136
        $region46: #{siglip_vision_embeddings.1} parent=43 // pred_check_branch
          %450 = sbr.rel (%p448) target = $region48
        $region47: #{siglip_vision_embeddings.1} parent=43 // pred_region
          %s451 = sand.u32 %s121, 1
          %s452 = scalar_lea.sflag [#allocation3], %s451
          %s453 = sand.u32 %s121, 1
          %s454 = smul.addr %s453, 16
          %s455 = scalar_lea.vmem [#allocation2], %s454
          %456 = dma.done %s452, 256
        $region48: #{siglip_vision_embeddings.1} parent=43 // pred_fallthru
          _
      $region44: #{siglip_vision_embeddings.1} parent=5 // pred_fallthru
        _
    $region6: #{siglip_vision_embeddings.1} parent=1 // loop_footer
      %s17 = sadd.s32 1, %s13
    $region7: #{siglip_vision_embeddings.1} parent=1 // loop_footer_branch
      %12 = sbr.rel target = $region3
    $region8: #{siglip_vision_embeddings.1} parent=1 // loop_exit
      _
    %457 = vsyncpa [#allocation3], 1
    %s458 = scalar_lea.sflag [#allocation3], 1
    %459 = vsyncpa %s458, 1

</llo_original>
